<compile_context>
chip_gen: v7x
topology: tpu7x:2x2x1
jax: 0.10.0
libtpu: 0.0.40
codegen_flags: <defaults>
</compile_context>

<pallas_src>
import functools

import numpy as np
import jax
import jax.numpy as jnp
from jax.experimental import pallas as pl
from jax.experimental.pallas import tpu as pltpu

_SQRT_2_OVER_PI = 0.7978845608028654
_GELU_CUBIC = 0.044715


def _gelu(x):
    # tanh-approximation GELU: cubic on the VALU, tanh on the EUP slot.
    # |gelu_tanh - gelu_erf| < ~1e-3, well inside the test tolerance.
    return 0.5 * x * (1.0 + jnp.tanh(_SQRT_2_OVER_PI * (x + _GELU_CUBIC * x * x * x)))


# --------------------------------- kernels ------------------------------------
def conv1_kernel(x_ref, mask_ref, w1_ref, z_ref, s_ref, q_ref, *, offs):
    """3x3 dense conv (pad=1) as 9 per-tap MXU matmul-accumulates + BN1 partial stats.

    One grid step = one sample; the tile is that sample's (C, H*W) lane slab,
    so lane rolls wrap only inside the sample and the 0/1 masks reproduce the
    zero padding exactly (halo-free M tiling).
    """
    f32, bf16 = jnp.float32, jnp.bfloat16
    x = x_ref[...]                                    # (C, hw) f32
    C, hw = x.shape
    masks = mask_ref[...]                             # (9, hw) f32 0/1 validity
    w1 = w1_ref[...]                                  # (C, 9C) bf16, hoisted load

    acc = None
    for k, off in enumerate(offs):
        wk = w1[:, k * C:(k + 1) * C]                 # (C, C) bf16 tap weights
        if off == 0:                                  # center tap: no roll, no mask
            term = jnp.dot(wk, x.astype(bf16), preferred_element_type=f32)
        else:
            # roll in f32 (safe XLU lowering), cast the tap to bf16 for the MXU.
            # Masking the matmul *output* is exact (mask is per-lane / per-column).
            rolled = pltpu.roll(x, shift=(-off) % hw, axis=1)
            term = jnp.dot(wk, rolled.astype(bf16),
                           preferred_element_type=f32) * masks[k:k + 1, :]
        acc = term if acc is None else acc + term

    z_ref[...] = acc
    # fused single-pass BN statistics: per-channel sum and sum-of-squares
    s_ref[...] = jnp.sum(acc, axis=1, keepdims=True)[None]
    q_ref[...] = jnp.sum(acc * acc, axis=1, keepdims=True)[None]


def dwconv_kernel(z_ref, mask_ref, scale1_ref, shift1_ref, wdw_ref,
                  d_ref, s_ref, q_ref, *, offs):
    """Folded BN1 + GELU + depthwise 3x3 conv (VPU) + BN2 partial stats."""
    z = z_ref[...]                                    # (C, hw) f32
    C, hw = z.shape
    y = _gelu(z * scale1_ref[...] + shift1_ref[...])  # BN1 folded to scale/shift
    masks = mask_ref[...]                             # (9, hw)
    wdw = wdw_ref[...]                                # (C, 9) f32, hoisted load

    d = None
    for k, off in enumerate(offs):
        wk = wdw[:, k:k + 1]                          # (C, 1)
        if off == 0:                                  # accumulator init = center tap
            term = y * wk
        else:
            term = pltpu.roll(y, shift=(-off) % hw, axis=1) * masks[k:k + 1, :] * wk
        d = term if d is None else d + term

    d_ref[...] = d
    s_ref[...] = jnp.sum(d, axis=1, keepdims=True)[None]
    q_ref[...] = jnp.sum(d * d, axis=1, keepdims=True)[None]


def pwconv_se_kernel(d_ref, x_ref, scale2_ref, shift2_ref, wpw_ref,
                     wse1_ref, bse1_ref, wse2_ref, bse2_ref, out_ref, *, inv_hw):
    """Folded BN2 + GELU + 1x1 conv (MXU) + per-sample SE gate + residual."""
    f32, bf16 = jnp.float32, jnp.bfloat16
    u_in = _gelu(d_ref[...] * scale2_ref[...] + shift2_ref[...])
    u = jnp.dot(wpw_ref[...], u_in.astype(bf16), preferred_element_type=f32)   # (C, hw)

    # squeeze-and-excite: tile == one sample, so GAP is a plain lane reduction
    avg = jnp.sum(u, axis=1, keepdims=True) * inv_hw                            # (C, 1)
    h1 = _gelu(jnp.dot(wse1_ref[...], avg.astype(bf16),
                       preferred_element_type=f32) + bse1_ref[...])             # (C/4, 1)
    gate = jax.nn.sigmoid(jnp.dot(wse2_ref[...], h1.astype(bf16),
                                  preferred_element_type=f32) + bse2_ref[...])  # (C, 1)

    # gate applied as a per-channel lane splat; residual fused into the same store
    out_ref[...] = (u * gate + x_ref[...]).astype(out_ref.dtype)


# ------------------------------- wrapper --------------------------------------
def _fold_bn(s_parts, q_parts, gamma, beta, m_total, eps=1e-5):
    # C-sized work: reduce per-tile partial sums, fold BN into one scale/shift.
    s = jnp.sum(s_parts, axis=0)                      # (C, 1)
    q = jnp.sum(q_parts, axis=0)                      # (C, 1)
    mean = s / m_total
    var = q / m_total - mean * mean                   # biased batch variance (training mode)
    scale = gamma * jax.lax.rsqrt(var + eps)
    return scale, beta - mean * scale


def efficient_block_forward(x_nchw, params, eps=1e-5):
    N, C, H, W = x_nchw.shape
    hw = H * W
    M = N * hw
    assert hw % 128 == 0, "H*W must be a multiple of 128 (lane tile)"
    # channels on sublanes, flattened spatial (sample-major) on lanes
    x_cm = jnp.transpose(x_nchw, (1, 0, 2, 3)).reshape(C, M)
    offs = tuple((ky - 1) * W + (kx - 1) for ky in range(3) for kx in range(3))

    tile = pl.BlockSpec((C, hw), lambda n: (0, n))              # per-sample lane slab
    part = pl.BlockSpec((1, C, 1), lambda n: (n, 0, 0))         # per-tile BN partials
    full = lambda a: pl.BlockSpec(a.shape, lambda n, _nd=None: (0,) * a.ndim)
    par = pltpu.CompilerParams(dimension_semantics=("parallel",))

    # ---- pass 1: dense 3x3 conv (per-tap bf16 MXU accumulate) + BN1 stats ----
    z, s1, q1 = pl.pallas_call(
        functools.partial(conv1_kernel, offs=offs),
        grid=(N,),
        in_specs=[tile, full(params["tap_mask"]), full(params["w1_k"])],
        out_specs=[tile, part, part],
        out_shape=(jax.ShapeDtypeStruct((C, M), jnp.float32),
                   jax.ShapeDtypeStruct((N, C, 1), jnp.float32),
                   jax.ShapeDtypeStruct((N, C, 1), jnp.float32)),
        compiler_params=par,
    )(x_cm, params["tap_mask"], params["w1_k"])
    scale1, shift1 = _fold_bn(s1, q1, params["g1_k"], params["b1_k"], M, eps)

    # ---- pass 2: folded BN1 + GELU + depthwise 3x3 conv + BN2 stats ----------
    d, s2, q2 = pl.pallas_call(
        functools.partial(dwconv_kernel, offs=offs),
        grid=(N,),
        in_specs=[tile, full(params["tap_mask"]), full(scale1), full(shift1),
                  full(params["wdw_k"])],
        out_specs=[tile, part, part],
        out_shape=(jax.ShapeDtypeStruct((C, M), jnp.float32),
                   jax.ShapeDtypeStruct((N, C, 1), jnp.float32),
                   jax.ShapeDtypeStruct((N, C, 1), jnp.float32)),
        compiler_params=par,
    )(z, params["tap_mask"], scale1, shift1, params["wdw_k"])
    scale2, shift2 = _fold_bn(s2, q2, params["g2_k"], params["b2_k"], M, eps)

    # ---- pass 3: folded BN2 + GELU + 1x1 conv + SE gate + residual -----------
    out_cm = pl.pallas_call(
        functools.partial(pwconv_se_kernel, inv_hw=1.0 / hw),
        grid=(N,),
        in_specs=[tile, tile, full(scale2), full(shift2), full(params["wpw_k"]),
                  full(params["wse1_k"]), full(params["bse1_k"]),
                  full(params["wse2_k"]), full(params["bse2_k"])],
        out_specs=tile,
        out_shape=jax.ShapeDtypeStruct((C, M), jnp.float32),
        compiler_params=par,
    )(d, x_cm, scale2, shift2, params["wpw_k"],
      params["wse1_k"], params["bse1_k"], params["wse2_k"], params["bse2_k"])

    return jnp.transpose(out_cm.reshape(C, N, H, W), (1, 0, 2, 3))


# ---------------------- parameter / mask construction --------------------------
def spectral_normalize(w):
    # spectral_norm semantics: divide by the largest singular value of
    # weight.reshape(out_channels, -1).  Exact SVD, host-side precompute
    # (torch uses one power-iteration step, so checkpoints differ slightly).
    sigma = jnp.linalg.svd(w.reshape(w.shape[0], -1), compute_uv=False)[0]
    return w / sigma


def build_tap_masks(H, W):
    # mask[k, h*W + w] = 1 iff the tap-k neighbour of (h, w) lies inside the
    # image (reproduces pad=1 zero padding after the per-sample lane roll).
    m = np.zeros((9, H * W), np.float32)
    h = np.arange(H)
    w = np.arange(W)
    for ky in range(3):
        for kx in range(3):
            vh = (h + ky - 1 >= 0) & (h + ky - 1 < H)
            vw = (w + kx - 1 >= 0) & (w + kx - 1 < W)
            m[ky * 3 + kx] = np.outer(vh, vw).astype(np.float32).reshape(-1)
    return jnp.asarray(m)                                   # (9, H*W)


def build_params(key, C, H, W):
    C4 = C // 4
    ks = jax.random.split(key, 9)
    w1 = jax.random.normal(ks[0], (C, C, 3, 3), jnp.float32) * 0.2
    wdw = jax.random.normal(ks[1], (C, 1, 3, 3), jnp.float32) * 0.2
    wpw = jax.random.normal(ks[2], (C, C, 1, 1), jnp.float32) * 0.2
    wse1 = jax.random.normal(ks[3], (C4, C, 1, 1), jnp.float32) * 0.3
    bse1 = jax.random.normal(ks[4], (C4,), jnp.float32) * 0.1
    wse2 = jax.random.normal(ks[5], (C, C4, 1, 1), jnp.float32) * 0.3
    bse2 = jax.random.normal(ks[6], (C,), jnp.float32) * 0.1
    g1 = 1.0 + 0.1 * jax.random.normal(ks[7], (C,), jnp.float32)
    b1 = 0.1 * jax.random.normal(ks[8], (C,), jnp.float32)
    g2 = jnp.ones((C,), jnp.float32)
    b2 = jnp.zeros((C,), jnp.float32)

    w1_sn, wdw_sn, wpw_sn = map(spectral_normalize, (w1, wdw, wpw))

    return {
        # reference (NCHW / OIHW) forms
        "w1_sn": w1_sn, "wdw_sn": wdw_sn, "wpw_sn": wpw_sn,
        "g1_raw": g1, "b1_raw": b1, "g2_raw": g2, "b2_raw": b2,
        "wse1_raw": wse1, "bse1_raw": bse1, "wse2_raw": wse2, "bse2_raw": bse2,
        # kernel-layout forms (channels on sublanes; MXU weights pre-cast to bf16)
        "w1_k": jnp.transpose(w1_sn, (0, 2, 3, 1)).reshape(C, 9 * C).astype(jnp.bfloat16),
        "wdw_k": wdw_sn[:, 0, :, :].reshape(C, 9),           # depthwise runs on VPU: f32
        "wpw_k": wpw_sn[:, :, 0, 0].astype(jnp.bfloat16),
        "g1_k": g1[:, None], "b1_k": b1[:, None],
        "g2_k": g2[:, None], "b2_k": b2[:, None],
        "wse1_k": wse1[:, :, 0, 0].astype(jnp.bfloat16), "bse1_k": bse1[:, None],
        "wse2_k": wse2[:, :, 0, 0].astype(jnp.bfloat16), "bse2_k": bse2[:, None],
        "tap_mask": build_tap_masks(H, W),
    }


# ------------------------------ pure-JAX reference ----------------------------
def reference_forward(x, p, eps=1e-5):
    C = x.shape[1]
    conv = lambda xx, w, pad, g=1: jax.lax.conv_general_dilated(
        xx, w, (1, 1), pad, dimension_numbers=("NCHW", "OIHW", "NCHW"),
        feature_group_count=g)

    def bn(xx, gamma, beta):
        m = xx.mean(axis=(0, 2, 3), keepdims=True)
        v = ((xx - m) ** 2).mean(axis=(0, 2, 3), keepdims=True)
        return (xx - m) * jax.lax.rsqrt(v + eps) * gamma.reshape(1, -1, 1, 1) \
            + beta.reshape(1, -1, 1, 1)

    gelu = lambda v: jax.nn.gelu(v, approximate=False)
    pad1, pad0 = ((1, 1), (1, 1)), ((0, 0), (0, 0))

    out = gelu(bn(conv(x, p["w1_sn"], pad1), p["g1_raw"], p["b1_raw"]))
    out = gelu(bn(conv(out, p["wdw_sn"], pad1, g=C), p["g2_raw"], p["b2_raw"]))
    out = conv(out, p["wpw_sn"], pad0)
    se = out.mean(axis=(2, 3), keepdims=True)
    se = gelu(conv(se, p["wse1_raw"], pad0) + p["bse1_raw"].reshape(1, -1, 1, 1))
    se = jax.nn.sigmoid(conv(se, p["wse2_raw"], pad0) + p["bse2_raw"].reshape(1, -1, 1, 1))
    return out * se + x


# ----------------------------------- main --------------------------------------
if __name__ == "__main__":
    N, C, H, W = 2, 8, 16, 16       # channels divisible by 4 (SE bottleneck), H*W % 128 == 0
    key = jax.random.PRNGKey(0)
    kx, kp = jax.random.split(key)
    x = jax.random.normal(kx, (N, C, H, W), jnp.float32)
    params = build_params(kp, C, H, W)

    out = jax.block_until_ready(efficient_block_forward(x, params))

    ref = reference_forward(x, params)
    # tolerance covers bf16 MXU operands + tanh-GELU vs the exact f32/erf reference
    np.testing.assert_allclose(np.asarray(out), np.asarray(ref), rtol=3e-2, atol=3e-2)
    print("KERNEL_OK")
</pallas_src>

<mosaic_0001>
module attributes {stable_mosaic.version = 11 : i64} {
  func.func @conv1_kernel(%arg0: i32, %arg1: memref<8x256xf32, #tpu.memory_space<vmem>>, %arg2: memref<9x256xf32, #tpu.memory_space<vmem>>, %arg3: memref<8x72xbf16, #tpu.memory_space<vmem>>, %arg4: memref<8x256xf32, #tpu.memory_space<vmem>>, %arg5: memref<1x8x1xf32, #tpu.memory_space<vmem>>, %arg6: memref<1x8x1xf32, #tpu.memory_space<vmem>>) attributes {dimension_semantics = [#tpu.dimension_semantics<parallel>], iteration_bounds = array<i64: 2>, scalar_prefetch = 0 : i64, scratch_operands = 0 : i64, tpu.core_type = #tpu.core_type<tc>, window_params = [{transform_indices = @transform_0, window_bounds = array<i64: 8, 256>}, {pipeline_mode = #tpu.pipeline_mode<synchronous>, transform_indices = @transform_1, window_bounds = array<i64: 9, 256>}, {pipeline_mode = #tpu.pipeline_mode<synchronous>, transform_indices = @transform_2, window_bounds = array<i64: 8, 72>}, {transform_indices = @transform_3, window_bounds = array<i64: 8, 256>}, {transform_indices = @transform_4, window_bounds = array<i64: 1, 8, 1>}, {transform_indices = @transform_5, window_bounds = array<i64: 1, 8, 1>}]} {
    %c0 = arith.constant 0 : index
    %c0_0 = arith.constant 0 : index
    %0 = vector.load %arg1[%c0, %c0_0] : memref<8x256xf32, #tpu.memory_space<vmem>>, vector<8x256xf32>
    %c0_1 = arith.constant 0 : index
    %c0_2 = arith.constant 0 : index
    %1 = vector.load %arg2[%c0_1, %c0_2] : memref<9x256xf32, #tpu.memory_space<vmem>>, vector<9x256xf32>
    %c0_3 = arith.constant 0 : index
    %c0_4 = arith.constant 0 : index
    %2 = vector.load %arg3[%c0_3, %c0_4] : memref<8x72xbf16, #tpu.memory_space<vmem>>, vector<8x72xbf16>
    %3 = vector.extract_strided_slice %2 {offsets = [0, 0], sizes = [8, 8], strides = [1, 1]} : vector<8x72xbf16> to vector<8x8xbf16>
    %c17_i32 = arith.constant 17 : i32
    %4 = tpu.dynamic_rotate %0 by %c17_i32 dim 1 : vector<8x256xf32>, i32 -> vector<8x256xf32>
    %5 = arith.truncf %4 : vector<8x256xf32> to vector<8x256xbf16>
    %cst = arith.constant dense<0.000000e+00> : vector<8x256xf32>
    %6 = tpu.matmul %3, %5, %cst {dimension_numbers = #tpu.dot_dimension_numbers<[1], [0], [0], [1], [0, 0, 1, 1], [], []>} : vector<8x8xbf16>, vector<8x256xbf16>, vector<8x256xf32> -> vector<8x256xf32>
    %7 = vector.extract_strided_slice %1 {offsets = [0, 0], sizes = [1, 256], strides = [1, 1]} : vector<9x256xf32> to vector<1x256xf32>
    %8 = vector.broadcast %7 : vector<1x256xf32> to vector<8x256xf32>
    %9 = arith.mulf %6, %8 : vector<8x256xf32>
    %10 = vector.extract_strided_slice %2 {offsets = [0, 8], sizes = [8, 8], strides = [1, 1]} : vector<8x72xbf16> to vector<8x8xbf16>
    %c16_i32 = arith.constant 16 : i32
    %11 = tpu.dynamic_rotate %0 by %c16_i32 dim 1 : vector<8x256xf32>, i32 -> vector<8x256xf32>
    %12 = arith.truncf %11 : vector<8x256xf32> to vector<8x256xbf16>
    %cst_5 = arith.constant dense<0.000000e+00> : vector<8x256xf32>
    %13 = tpu.matmul %10, %12, %cst_5 {dimension_numbers = #tpu.dot_dimension_numbers<[1], [0], [0], [1], [0, 0, 1, 1], [], []>} : vector<8x8xbf16>, vector<8x256xbf16>, vector<8x256xf32> -> vector<8x256xf32>
    %14 = vector.extract_strided_slice %1 {offsets = [1, 0], sizes = [1, 256], strides = [1, 1]} : vector<9x256xf32> to vector<1x256xf32>
    %15 = vector.broadcast %14 : vector<1x256xf32> to vector<8x256xf32>
    %16 = arith.mulf %13, %15 : vector<8x256xf32>
    %17 = arith.addf %9, %16 : vector<8x256xf32>
    %18 = vector.extract_strided_slice %2 {offsets = [0, 16], sizes = [8, 8], strides = [1, 1]} : vector<8x72xbf16> to vector<8x8xbf16>
    %c15_i32 = arith.constant 15 : i32
    %19 = tpu.dynamic_rotate %0 by %c15_i32 dim 1 : vector<8x256xf32>, i32 -> vector<8x256xf32>
    %20 = arith.truncf %19 : vector<8x256xf32> to vector<8x256xbf16>
    %cst_6 = arith.constant dense<0.000000e+00> : vector<8x256xf32>
    %21 = tpu.matmul %18, %20, %cst_6 {dimension_numbers = #tpu.dot_dimension_numbers<[1], [0], [0], [1], [0, 0, 1, 1], [], []>} : vector<8x8xbf16>, vector<8x256xbf16>, vector<8x256xf32> -> vector<8x256xf32>
    %22 = vector.extract_strided_slice %1 {offsets = [2, 0], sizes = [1, 256], strides = [1, 1]} : vector<9x256xf32> to vector<1x256xf32>
    %23 = vector.broadcast %22 : vector<1x256xf32> to vector<8x256xf32>
    %24 = arith.mulf %21, %23 : vector<8x256xf32>
    %25 = arith.addf %17, %24 : vector<8x256xf32>
    %26 = vector.extract_strided_slice %2 {offsets = [0, 24], sizes = [8, 8], strides = [1, 1]} : vector<8x72xbf16> to vector<8x8xbf16>
    %c1_i32 = arith.constant 1 : i32
    %27 = tpu.dynamic_rotate %0 by %c1_i32 dim 1 : vector<8x256xf32>, i32 -> vector<8x256xf32>
    %28 = arith.truncf %27 : vector<8x256xf32> to vector<8x256xbf16>
    %cst_7 = arith.constant dense<0.000000e+00> : vector<8x256xf32>
    %29 = tpu.matmul %26, %28, %cst_7 {dimension_numbers = #tpu.dot_dimension_numbers<[1], [0], [0], [1], [0, 0, 1, 1], [], []>} : vector<8x8xbf16>, vector<8x256xbf16>, vector<8x256xf32> -> vector<8x256xf32>
    %30 = vector.extract_strided_slice %1 {offsets = [3, 0], sizes = [1, 256], strides = [1, 1]} : vector<9x256xf32> to vector<1x256xf32>
    %31 = vector.broadcast %30 : vector<1x256xf32> to vector<8x256xf32>
    %32 = arith.mulf %29, %31 : vector<8x256xf32>
    %33 = arith.addf %25, %32 : vector<8x256xf32>
    %34 = vector.extract_strided_slice %2 {offsets = [0, 32], sizes = [8, 8], strides = [1, 1]} : vector<8x72xbf16> to vector<8x8xbf16>
    %35 = arith.truncf %0 : vector<8x256xf32> to vector<8x256xbf16>
    %cst_8 = arith.constant dense<0.000000e+00> : vector<8x256xf32>
    %36 = tpu.matmul %34, %35, %cst_8 {dimension_numbers = #tpu.dot_dimension_numbers<[1], [0], [0], [1], [0, 0, 1, 1], [], []>} : vector<8x8xbf16>, vector<8x256xbf16>, vector<8x256xf32> -> vector<8x256xf32>
    %37 = arith.addf %33, %36 : vector<8x256xf32>
    %38 = vector.extract_strided_slice %2 {offsets = [0, 40], sizes = [8, 8], strides = [1, 1]} : vector<8x72xbf16> to vector<8x8xbf16>
    %c255_i32 = arith.constant 255 : i32
    %39 = tpu.dynamic_rotate %0 by %c255_i32 dim 1 : vector<8x256xf32>, i32 -> vector<8x256xf32>
    %40 = arith.truncf %39 : vector<8x256xf32> to vector<8x256xbf16>
    %cst_9 = arith.constant dense<0.000000e+00> : vector<8x256xf32>
    %41 = tpu.matmul %38, %40, %cst_9 {dimension_numbers = #tpu.dot_dimension_numbers<[1], [0], [0], [1], [0, 0, 1, 1], [], []>} : vector<8x8xbf16>, vector<8x256xbf16>, vector<8x256xf32> -> vector<8x256xf32>
    %42 = vector.extract_strided_slice %1 {offsets = [5, 0], sizes = [1, 256], strides = [1, 1]} : vector<9x256xf32> to vector<1x256xf32>
    %43 = vector.broadcast %42 : vector<1x256xf32> to vector<8x256xf32>
    %44 = arith.mulf %41, %43 : vector<8x256xf32>
    %45 = arith.addf %37, %44 : vector<8x256xf32>
    %46 = vector.extract_strided_slice %2 {offsets = [0, 48], sizes = [8, 8], strides = [1, 1]} : vector<8x72xbf16> to vector<8x8xbf16>
    %c241_i32 = arith.constant 241 : i32
    %47 = tpu.dynamic_rotate %0 by %c241_i32 dim 1 : vector<8x256xf32>, i32 -> vector<8x256xf32>
    %48 = arith.truncf %47 : vector<8x256xf32> to vector<8x256xbf16>
    %cst_10 = arith.constant dense<0.000000e+00> : vector<8x256xf32>
    %49 = tpu.matmul %46, %48, %cst_10 {dimension_numbers = #tpu.dot_dimension_numbers<[1], [0], [0], [1], [0, 0, 1, 1], [], []>} : vector<8x8xbf16>, vector<8x256xbf16>, vector<8x256xf32> -> vector<8x256xf32>
    %50 = vector.extract_strided_slice %1 {offsets = [6, 0], sizes = [1, 256], strides = [1, 1]} : vector<9x256xf32> to vector<1x256xf32>
    %51 = vector.broadcast %50 : vector<1x256xf32> to vector<8x256xf32>
    %52 = arith.mulf %49, %51 : vector<8x256xf32>
    %53 = arith.addf %45, %52 : vector<8x256xf32>
    %54 = vector.extract_strided_slice %2 {offsets = [0, 56], sizes = [8, 8], strides = [1, 1]} : vector<8x72xbf16> to vector<8x8xbf16>
    %c240_i32 = arith.constant 240 : i32
    %55 = tpu.dynamic_rotate %0 by %c240_i32 dim 1 : vector<8x256xf32>, i32 -> vector<8x256xf32>
    %56 = arith.truncf %55 : vector<8x256xf32> to vector<8x256xbf16>
    %cst_11 = arith.constant dense<0.000000e+00> : vector<8x256xf32>
    %57 = tpu.matmul %54, %56, %cst_11 {dimension_numbers = #tpu.dot_dimension_numbers<[1], [0], [0], [1], [0, 0, 1, 1], [], []>} : vector<8x8xbf16>, vector<8x256xbf16>, vector<8x256xf32> -> vector<8x256xf32>
    %58 = vector.extract_strided_slice %1 {offsets = [7, 0], sizes = [1, 256], strides = [1, 1]} : vector<9x256xf32> to vector<1x256xf32>
    %59 = vector.broadcast %58 : vector<1x256xf32> to vector<8x256xf32>
    %60 = arith.mulf %57, %59 : vector<8x256xf32>
    %61 = arith.addf %53, %60 : vector<8x256xf32>
    %62 = vector.extract_strided_slice %2 {offsets = [0, 64], sizes = [8, 8], strides = [1, 1]} : vector<8x72xbf16> to vector<8x8xbf16>
    %c239_i32 = arith.constant 239 : i32
    %63 = tpu.dynamic_rotate %0 by %c239_i32 dim 1 : vector<8x256xf32>, i32 -> vector<8x256xf32>
    %64 = arith.truncf %63 : vector<8x256xf32> to vector<8x256xbf16>
    %cst_12 = arith.constant dense<0.000000e+00> : vector<8x256xf32>
    %65 = tpu.matmul %62, %64, %cst_12 {dimension_numbers = #tpu.dot_dimension_numbers<[1], [0], [0], [1], [0, 0, 1, 1], [], []>} : vector<8x8xbf16>, vector<8x256xbf16>, vector<8x256xf32> -> vector<8x256xf32>
    %66 = vector.extract_strided_slice %1 {offsets = [8, 0], sizes = [1, 256], strides = [1, 1]} : vector<9x256xf32> to vector<1x256xf32>
    %67 = vector.broadcast %66 : vector<1x256xf32> to vector<8x256xf32>
    %68 = arith.mulf %65, %67 : vector<8x256xf32>
    %69 = arith.addf %61, %68 : vector<8x256xf32>
    %c0_13 = arith.constant 0 : index
    %c0_14 = arith.constant 0 : index
    %70 = vector.load %arg4[%c0_13, %c0_14] : memref<8x256xf32, #tpu.memory_space<vmem>>, vector<8x256xf32>
    tpu.vector_store %arg4[%c0_13, %c0_14], %69 {strides = array<i32>} : memref<8x256xf32, #tpu.memory_space<vmem>>, vector<8x256xf32>,
    %cst_15 = arith.constant dense<0.000000e+00> : vector<8xf32>
    %71 = vector.multi_reduction <add>, %69, %cst_15 [1] : vector<8x256xf32> to vector<8xf32>
    %72 = vector.shape_cast %71 : vector<8xf32> to vector<8x1xf32>
    %73 = vector.shape_cast %72 : vector<8x1xf32> to vector<1x8x1xf32>
    %c0_16 = arith.constant 0 : index
    %c0_17 = arith.constant 0 : index
    %c0_18 = arith.constant 0 : index
    %74 = vector.load %arg5[%c0_16, %c0_17, %c0_18] : memref<1x8x1xf32, #tpu.memory_space<vmem>>, vector<1x8x1xf32>
    tpu.vector_store %arg5[%c0_16, %c0_17, %c0_18], %73 {strides = array<i32>} : memref<1x8x1xf32, #tpu.memory_space<vmem>>, vector<1x8x1xf32>,
    %75 = arith.mulf %69, %69 : vector<8x256xf32>
    %cst_19 = arith.constant dense<0.000000e+00> : vector<8xf32>
    %76 = vector.multi_reduction <add>, %75, %cst_19 [1] : vector<8x256xf32> to vector<8xf32>
    %77 = vector.shape_cast %76 : vector<8xf32> to vector<8x1xf32>
    %78 = vector.shape_cast %77 : vector<8x1xf32> to vector<1x8x1xf32>
    %c0_20 = arith.constant 0 : index
    %c0_21 = arith.constant 0 : index
    %c0_22 = arith.constant 0 : index
    %79 = vector.load %arg6[%c0_20, %c0_21, %c0_22] : memref<1x8x1xf32, #tpu.memory_space<vmem>>, vector<1x8x1xf32>
    tpu.vector_store %arg6[%c0_20, %c0_21, %c0_22], %78 {strides = array<i32>} : memref<1x8x1xf32, #tpu.memory_space<vmem>>, vector<1x8x1xf32>,
    return
  }
  func.func @transform_0(%arg0: i32) -> (i32, i32) {
    %c0_i32 = arith.constant 0 : i32
    %c0_i32_0 = arith.constant 0 : i32
    return %c0_i32, %arg0 : i32, i32
  }
  func.func @transform_1(%arg0: i32) -> (i32, i32) {
    %c0_i32 = arith.constant 0 : i32
    %c0_i32_0 = arith.constant 0 : i32
    %c0_i32_1 = arith.constant 0 : i32
    return %c0_i32, %c0_i32_0 : i32, i32
  }
  func.func @transform_2(%arg0: i32) -> (i32, i32) {
    %c0_i32 = arith.constant 0 : i32
    %c0_i32_0 = arith.constant 0 : i32
    %c0_i32_1 = arith.constant 0 : i32
    return %c0_i32, %c0_i32_0 : i32, i32
  }
  func.func @transform_3(%arg0: i32) -> (i32, i32) {
    %c0_i32 = arith.constant 0 : i32
    %c0_i32_0 = arith.constant 0 : i32
    return %c0_i32, %arg0 : i32, i32
  }
  func.func @transform_4(%arg0: i32) -> (i32, i32, i32) {
    %c0_i32 = arith.constant 0 : i32
    %c0_i32_0 = arith.constant 0 : i32
    %c0_i32_1 = arith.constant 0 : i32
    return %arg0, %c0_i32, %c0_i32_0 : i32, i32, i32
  }
  func.func @transform_5(%arg0: i32) -> (i32, i32, i32) {
    %c0_i32 = arith.constant 0 : i32
    %c0_i32_0 = arith.constant 0 : i32
    %c0_i32_1 = arith.constant 0 : i32
    return %arg0, %c0_i32, %c0_i32_0 : i32, i32, i32
  }
}

</mosaic_0001>

<llo_original>
// kernel: tpu_custom_call.1
$region0: #{tpu_custom_call.1}
  #allocation0 [shape = 'u32[]', space=smem, size = 0x4, offset = 0x4, fixed_abs, tag = 'smem constant byte address 0x4 - core index']
  #allocation1 [shape = 'u32[144,128]{1,0:T(1,128)}', space=vmem, size = 0x12000, scoped, tag = 'internal scratch']
  %s0 = inlined_call_operand.hbm [shape: f32[8,512], index: 0, kind: input, shape index: {}]
  %s1 = inlined_call_operand.hbm [shape: f32[9,256], index: 1, kind: input, shape index: {}]
  %s2 = inlined_call_operand.vmem [shape: bf16[8,72], index: 2, kind: input, shape index: {}]
  %s3 = inlined_call_operand.hbm [shape: f32[8,512], index: 3, kind: output, shape index: {0}]
  %s4 = inlined_call_operand.vmem [shape: f32[2,8,1], index: 4, kind: output, shape index: {1}]
  %s5 = inlined_call_operand.vmem [shape: f32[2,8,1], index: 5, kind: output, shape index: {2}]
  %6 = xla_tuple %s3, %s4, %s5
  %s7 = sld [smem:[#allocation0]]
  $region69: #{tpu_custom_call.1} parent=0
    _
  %s9 = ssub.s32 1, %s7
  %s10 = scalar_select 0, %s9, %s7
  $region1: #{tpu_custom_call.1} parent=0
    #allocation2 [shape = 'u8[16384]{0}', space=vmem, size = 0x4000, scoped, tag = 'input window, operand 0']
    #allocation3 [shape = 's32[2]{0}', space=sflag, size = 0x8, scoped, tag = 'scoped memory for tpu_custom_call.1']
    #allocation4 [shape = 's32[2]{0}', space=sflag, size = 0x8, scoped, tag = 'scoped memory for tpu_custom_call.1']
    #allocation5 [shape = 'u8[16384]{0}', space=vmem, size = 0x4000, scoped, tag = 'input window, operand 1, single buffered']
    #allocation6 [shape = 's32[1]{0}', space=sflag, size = 0x4, scoped, tag = 'scoped memory for tpu_custom_call.1']
    #allocation7 [shape = 'u8[16384]{0}', space=vmem, size = 0x4000, scoped, tag = 'output window, operand 0']
    %11 = vsyncpa [#allocation3], 0
    %s12 = scalar_lea.sflag [#allocation3], 1
    %13 = vsyncpa %s12, 0
    %14 = vsyncpa [#allocation6], 0
    %15 = vsyncpa [#allocation4], 0
    %s16 = scalar_lea.sflag [#allocation4], 1
    %17 = vsyncpa %s16, 0
    loop: start=0, step=1, limit=4
    $region2: #{tpu_custom_call.1} parent=1 // loop_pre_header
      _
    $region3: #{tpu_custom_call.1} parent=1 // loop_header
      %s19 = sphi 0, %s23
      %p20 = scmp.ge.s32.totalorder %s19, 4
      %s29 = sphi 0, %s31
      %s32 = sphi 0, %s29
      %s33 = sphi 0, %s32
      %s49 = sphi 0, %s33
      %s53 = sphi 0, %s53
      %s55 = sphi 0, %s53
      %s56 = sphi 0, %s55
      %s70 = sphi 0, %s56
      %s74 = sphi 0, %s74
      %s76 = sphi 0, %s74
      %s77 = sphi 0, %s76
      %s91 = sphi 0, %s77
      %s97 = sphi 0, %s99
      %s100 = sphi 0, %s97
      %s101 = sphi 0, %s100
      %s117 = sphi 0, %s101
      %s123 = sphi 0, %s125
      %s126 = sphi 0, %s123
      %s127 = sphi 0, %s126
      %s143 = sphi 0, %s127
      %s149 = sphi 0, %s151
      %s152 = sphi 0, %s149
      %s153 = sphi 0, %s152
      %s169 = sphi 0, %s153
    $region4: #{tpu_custom_call.1} parent=1 // loop_header_branch
      %22 = sbr.rel (%p20) target = $region8
    $region5: #{tpu_custom_call.1} parent=1 // loop_body
      %s24 = ssub.s32 %s19, 1
      %s25 = ssub.s32 %s19, 2
      %s26 = sadd.s32 %s19, 1
      %s27 = ssub.s32 %s19, %s26
      %p28 = scmp.eq.s32.totalorder %s27, 0
      %s30 = sadd.s32 %s29, 1
      %s31 = scalar_select %p28, %s29, %s30
      %p34 = pneg %p28
      %p35 = scmp.eq.s32.totalorder %s19, 1
      %p36 = por %p34, %p35
      %p37 = scmp.ne.s32.totalorder %s29, %s32
      %p38 = scmp.eq.s32.totalorder %s19, 0
      %p39 = por %p37, %p38
      %p40 = scmp.ne.s32.totalorder %s29, %s32
      %p41 = scmp.eq.s32.totalorder %s24, 1
      %p42 = por %p40, %p41
      %p43 = scmp.ne.s32.totalorder %s32, %s33
      %p44 = scmp.eq.s32.totalorder %s24, 0
      %p45 = por %p43, %p44
      %p46 = scmp.ne.s32.totalorder %s32, %s33
      %p47 = scmp.eq.s32.totalorder %s25, 1
      %p48 = por %p46, %p47
      %p50 = scmp.ne.s32.totalorder %s33, %s49
      %p51 = scmp.eq.s32.totalorder %s25, 0
      %p52 = por %p50, %p51
      %s54 = sadd.s32 %s53, 1
      %p57 = scmp.eq.s32.totalorder %s19, 1
      %p58 = scmp.ne.s32.totalorder %s53, %s55
      %p59 = scmp.eq.s32.totalorder %s19, 0
      %p60 = por %p58, %p59
      %p61 = scmp.ne.s32.totalorder %s53, %s55
      %p62 = scmp.eq.s32.totalorder %s24, 1
      %p63 = por %p61, %p62
      %p64 = scmp.ne.s32.totalorder %s55, %s56
      %p65 = scmp.eq.s32.totalorder %s24, 0
      %p66 = por %p64, %p65
      %p67 = scmp.ne.s32.totalorder %s55, %s56
      %p68 = scmp.eq.s32.totalorder %s25, 1
      %p69 = por %p67, %p68
      %p71 = scmp.ne.s32.totalorder %s56, %s70
      %p72 = scmp.eq.s32.totalorder %s25, 0
      %p73 = por %p71, %p72
      %s75 = sadd.s32 %s74, 1
      %p78 = scmp.eq.s32.totalorder %s19, 1
      %p79 = scmp.ne.s32.totalorder %s74, %s76
      %p80 = scmp.eq.s32.totalorder %s19, 0
      %p81 = por %p79, %p80
      %p82 = scmp.ne.s32.totalorder %s74, %s76
      %p83 = scmp.eq.s32.totalorder %s24, 1
      %p84 = por %p82, %p83
      %p85 = scmp.ne.s32.totalorder %s76, %s77
      %p86 = scmp.eq.s32.totalorder %s24, 0
      %p87 = por %p85, %p86
      %p88 = scmp.ne.s32.totalorder %s76, %s77
      %p89 = scmp.eq.s32.totalorder %s25, 1
      %p90 = por %p88, %p89
      %p92 = scmp.ne.s32.totalorder %s77, %s91
      %p93 = scmp.eq.s32.totalorder %s25, 0
      %p94 = por %p92, %p93
      %s95 = ssub.s32 %s19, %s26
      %p96 = scmp.eq.s32.totalorder %s95, 0
      %s98 = sadd.s32 %s97, 1
      %s99 = scalar_select %p96, %s97, %s98
      %p102 = pneg %p96
      %p103 = scmp.eq.s32.totalorder %s19, 1
      %p104 = por %p102, %p103
      %p105 = scmp.ne.s32.totalorder %s97, %s100
      %p106 = scmp.eq.s32.totalorder %s19, 0
      %p107 = por %p105, %p106
      %p108 = scmp.ne.s32.totalorder %s97, %s100
      %p109 = scmp.eq.s32.totalorder %s24, 1
      %p110 = por %p108, %p109
      %p111 = scmp.ne.s32.totalorder %s100, %s101
      %p112 = scmp.eq.s32.totalorder %s24, 0
      %p113 = por %p111, %p112
      %p114 = scmp.ne.s32.totalorder %s100, %s101
      %p115 = scmp.eq.s32.totalorder %s25, 1
      %p116 = por %p114, %p115
      %p118 = scmp.ne.s32.totalorder %s101, %s117
      %p119 = scmp.eq.s32.totalorder %s25, 0
      %p120 = por %p118, %p119
      %s121 = ssub.s32 %s19, %s26
      %p122 = scmp.eq.s32.totalorder %s121, 0
      %s124 = sadd.s32 %s123, 1
      %s125 = scalar_select %p122, %s123, %s124
      %p128 = pneg %p122
      %p129 = scmp.eq.s32.totalorder %s19, 1
      %p130 = por %p128, %p129
      %p131 = scmp.ne.s32.totalorder %s123, %s126
      %p132 = scmp.eq.s32.totalorder %s19, 0
      %p133 = por %p131, %p132
      %p134 = scmp.ne.s32.totalorder %s123, %s126
      %p135 = scmp.eq.s32.totalorder %s24, 1
      %p136 = por %p134, %p135
      %p137 = scmp.ne.s32.totalorder %s126, %s127
      %p138 = scmp.eq.s32.totalorder %s24, 0
      %p139 = por %p137, %p138
      %p140 = scmp.ne.s32.totalorder %s126, %s127
      %p141 = scmp.eq.s32.totalorder %s25, 1
      %p142 = por %p140, %p141
      %p144 = scmp.ne.s32.totalorder %s127, %s143
      %p145 = scmp.eq.s32.totalorder %s25, 0
      %p146 = por %p144, %p145
      %s147 = ssub.s32 %s19, %s26
      %p148 = scmp.eq.s32.totalorder %s147, 0
      %s150 = sadd.s32 %s149, 1
      %s151 = scalar_select %p148, %s149, %s150
      %p154 = pneg %p148
      %p155 = scmp.eq.s32.totalorder %s19, 1
      %p156 = por %p154, %p155
      %p157 = scmp.ne.s32.totalorder %s149, %s152
      %p158 = scmp.eq.s32.totalorder %s19, 0
      %p159 = por %p157, %p158
      %p160 = scmp.ne.s32.totalorder %s149, %s152
      %p161 = scmp.eq.s32.totalorder %s24, 1
      %p162 = por %p160, %p161
      %p163 = scmp.ne.s32.totalorder %s152, %s153
      %p164 = scmp.eq.s32.totalorder %s24, 0
      %p165 = por %p163, %p164
      %p166 = scmp.ne.s32.totalorder %s152, %s153
      %p167 = scmp.eq.s32.totalorder %s25, 1
      %p168 = por %p166, %p167
      %p170 = scmp.ne.s32.totalorder %s153, %s169
      %p171 = scmp.eq.s32.totalorder %s25, 0
      %p172 = por %p170, %p171
      %p173 = scmp.le.s32.totalorder 1, %s19
      %p174 = scmp.lt.s32.totalorder %s19, 3
      %p175 = pnand %p173, %p174
      %p176 = pneg %p175
      // Predicated region
      $region9: #{tpu_custom_call.1} parent=5 // pred_check
        _
      $region10: #{tpu_custom_call.1} parent=5 // pred_check_branch
        %178 = sbr.rel (%p175) target = $region12
      $region11: #{tpu_custom_call.1} parent=5 // pred_region
        %s179 = ssub.s32 %s19, 1
        // Predicated region
        $region13: #{tpu_custom_call.1} parent=11 // pred_check
          %p180 = pneg %p66
        $region14: #{tpu_custom_call.1} parent=11 // pred_check_branch
          %182 = sbr.rel (%p180) target = $region16
        $region15: #{tpu_custom_call.1} parent=11 // pred_region
          %s184 = ssub.s32 512, 512
          %185 = vsyncadd [#allocation6], %s184
          %s186 = sshll.u32 [#allocation5], 4
          %s187 = int_to_ptr.vmem [resolvable:$true] %s186
          %192 = dma.hbm_to_vmem [thread:$0]  %s1, 512, %s187, [#allocation6], 256, 256, 16
        $region16: #{tpu_custom_call.1} parent=11 // pred_fallthru
          _
        // Predicated region
        $region17: #{tpu_custom_call.1} parent=11 // pred_check
          %p193 = pneg %p87
        $region18: #{tpu_custom_call.1} parent=11 // pred_check_branch
          %195 = sbr.rel (%p193) target = $region20
        $region19: #{tpu_custom_call.1} parent=11 // pred_region
          _
        $region20: #{tpu_custom_call.1} parent=11 // pred_fallthru
          _
      $region12: #{tpu_custom_call.1} parent=5 // pred_fallthru
        _
      %p196 = scmp.lt.s32.totalorder %s19, 2
      // Predicated region
      $region21: #{tpu_custom_call.1} parent=5 // pred_check
        %p197 = pneg %p196
      $region22: #{tpu_custom_call.1} parent=5 // pred_check_branch
        %199 = sbr.rel (%p197) target = $region24
      $region23: #{tpu_custom_call.1} parent=5 // pred_region
        // Predicated region
        $region25: #{tpu_custom_call.1} parent=23 // pred_check
          %p200 = pneg %p39
        $region26: #{tpu_custom_call.1} parent=23 // pred_check_branch
          %202 = sbr.rel (%p200) target = $region28
        $region27: #{tpu_custom_call.1} parent=23 // pred_region
          %s203 = sand.u32 %s29, 1
          %s204 = scalar_lea.sflag [#allocation3], %s203
          %s205 = sand.u32 %s29, 1
          %s206 = smul.addr %s205, 16
          %s207 = scalar_lea.vmem [#allocation2], %s206
          %s208 = smul.u32 2, %s19
          %s210 = ssub.s32 256, 256
          %211 = vsyncadd %s204, %s210
          %s212 = smul.addr %s208, 128
          %s213 = scalar_lea.hbm %s0, %s212
          %s215 = sshll.u32 %s207, 4
          %s216 = int_to_ptr.vmem [resolvable:$true] %s215
          %218 = dma.hbm_to_vmem [thread:$0]  %s213, 256, %s216, %s204
        $region28: #{tpu_custom_call.1} parent=23 // pred_fallthru
          _
      $region24: #{tpu_custom_call.1} parent=5 // pred_fallthru
        _
      %p219 = scmp.le.s32.totalorder 1, %s19
      %p220 = scmp.lt.s32.totalorder %s19, 3
      %p221 = pnand %p219, %p220
      %p222 = pneg %p221
      // Predicated region
      $region29: #{tpu_custom_call.1} parent=5 // pred_check
        _
      $region30: #{tpu_custom_call.1} parent=5 // pred_check_branch
        %224 = sbr.rel (%p221) target = $region32
      $region31: #{tpu_custom_call.1} parent=5 // pred_region
        %s225 = ssub.s32 %s19, 1
        %s226 = sand.u32 %s32, 1
        %s227 = scalar_lea.sflag [#allocation3], %s226
        %s228 = sand.u32 %s32, 1
        %s229 = smul.addr %s228, 16
        %s230 = scalar_lea.vmem [#allocation2], %s229
        // Predicated region
        $region33: #{tpu_custom_call.1} parent=31 // pred_check
          %p231 = pneg %p45
        $region34: #{tpu_custom_call.1} parent=31 // pred_check_branch
          %233 = sbr.rel (%p231) target = $region36
        $region35: #{tpu_custom_call.1} parent=31 // pred_region
          %234 = dma.done %s227, 256
        $region36: #{tpu_custom_call.1} parent=31 // pred_fallthru
          _
        // Predicated region
        $region37: #{tpu_custom_call.1} parent=31 // pred_check
          %p235 = pneg %p66
        $region38: #{tpu_custom_call.1} parent=31 // pred_check_branch
          %237 = sbr.rel (%p235) target = $region40
        $region39: #{tpu_custom_call.1} parent=31 // pred_region
          %238 = dma.done [#allocation6], 512
        $region40: #{tpu_custom_call.1} parent=31 // pred_fallthru
          _
        %s239 = sand.u32 %s32, 1
        %s240 = scalar_lea.sflag [#allocation3], %s239
        %s241 = sand.u32 %s32, 1
        %s242 = smul.addr %s241, 16
        %s243 = scalar_lea.vmem [#allocation2], %s242
        %p244 = pneg %p45
        %p245 = pneg %p42
        %p246 = pneg %p66
        %p247 = pneg %p63
        %p248 = pneg %p87
        %p249 = pneg %p84
        %p250 = pneg %p113
        %p251 = pneg %p110
        %s252 = sand.u32 %s100, 1
        %s253 = scalar_lea.sflag [#allocation4], %s252
        %s254 = sand.u32 %s100, 1
        %s255 = smul.addr %s254, 16
        %s256 = scalar_lea.vmem [#allocation7], %s255
        %p257 = pneg %p139
        %p258 = pneg %p136
        %p259 = scmp.lt.s32.totalorder %s24, 1
        %s260 = scalar_select %p259, %s24, 1
        %s261 = smul.addr %s260, 8
        %s262 = scalar_lea.vmem %s4, %s261
        %p263 = pneg %p165
        %p264 = pneg %p162
        %p265 = scmp.lt.s32.totalorder %s24, 1
        %s266 = scalar_select %p265, %s24, 1
        %s267 = smul.addr %s266, 8
        %s268 = scalar_lea.vmem %s5, %s267
        %s269 = smul.u32 2, %s24
        %s270 = smul.u32 2, %s24
        %p271 = scmp.lt.s32.totalorder %s24, 1
        %s272 = scalar_select %p271, %s24, 1
        %s273 = smul.addr %s272, 8
        %s274 = scalar_lea.vmem %s4, %s273
        %p275 = scmp.lt.s32.totalorder %s24, 1
        %s276 = scalar_select %p275, %s24, 1
        %s277 = smul.addr %s276, 8
        %s278 = scalar_lea.vmem %s5, %s277
        %v280 = vld [vmem:[%s230] sm:$0xff]
        %v281 = vld [vmem:[%s230 + $0x8] sm:$0xff]
        %v282 = vld [vmem:[#allocation5] sm:$0xff]
        %v283 = vld [vmem:[#allocation5 + $0x8] sm:$0xff]
        %v284 = vld [vmem:[#allocation5 + $0x10] sm:$0x1]
        %v285 = vld [vmem:[#allocation5 + $0x18] sm:$0x1]
        %v286 = vld [vmem:[%s2] sm:$0xf]
        %287 = vrot.lane.b32.xlu0 %v280, 17
        %v288 = vpop.permute.xlu0 %287
        %289 = vrot.lane.b32.xlu0 %v281, 17
        %v290 = vpop.permute.xlu0 %289
        %v291 = vlaneseq
        %v292 = vand.u32 %v291, 127
        %vm293 = vcmp.lt.s32.totalorder %v292, 17
        %v294 = vsel %vm293, %v288, %v290
        %v295 = vsel %vm293, %v290, %v288
        %v296 = vpack.c.bf16 %v295, %v295
        %v297 = vpack.c.bf16 %v294, %v294
        %vm298 = vcmask 64512
        %v300 = vsel %vm298, %v286, 0
        %vm302 = vcmask 1043456
        %v304 = vsel %vm302, %v296, 0
        %v307 = vsel %vm302, %v297, 0
        %309 = vmatprep.subr.bf16.mxu0 %v307
        %310 = vmatpush1.bf16.msra.mxu0 %v304
        %311 = vmatprep.subr.bf16.mxu0 0
        %312 = vmatpush1.bf16.msra.mxu0 0
        %313 = vmatprep.subr.bf16.mxu0 0
        %314 = vmatpush1.bf16.msra.mxu0 0
        %315 = vmatprep.subr.bf16.mxu0 0
        %316 = vmatpush1.bf16.msra.mxu0 0
        %317 = vmatprep.subr.bf16.mxu0 0
        %318 = vmatpush1.bf16.msra.mxu0 0
        %319 = vmatprep.subr.bf16.mxu0 0
        %320 = vmatpush1.bf16.msra.mxu0 0
        %321 = vmatprep.subr.bf16.mxu0 0
        %322 = vmatpush1.bf16.msra.mxu0 0
        %323 = vmatprep.subr.bf16.mxu0 0
        %324 = vmatpush1.bf16.msra.mxu0 0
        %325 = vmatprep.subr.bf16.mxu0 0
        %326 = vmatpush1.bf16.msra.mxu0 0
        %327 = vmatprep.subr.bf16.mxu0 0
        %328 = vmatpush1.bf16.msra.mxu0 0
        %329 = vmatprep.subr.bf16.mxu0 0
        %330 = vmatpush1.bf16.msra.mxu0 0
        %331 = vmatprep.subr.bf16.mxu0 0
        %332 = vmatpush1.bf16.msra.mxu0 0
        %333 = vmatprep.subr.bf16.mxu0 0
        %334 = vmatpush1.bf16.msra.mxu0 0
        %335 = vmatprep.subr.bf16.mxu0 0
        %336 = vmatpush1.bf16.msra.mxu0 0
        %337 = vmatprep.subr.bf16.mxu0 0
        %338 = vmatpush1.bf16.msra.mxu0 0
        %339 = vmatprep.subr.bf16.mxu0 0
        %340 = vmatpush1.bf16.msra.mxu0 0
        %341 = vmatprep.mubr.bf16.mxu0 0
        %342 = vmatmul.mubr.bf16.gmra.mrb[0].mxu0 %v300
        %v343 = vpop.f32.mrb[0].mxu0
        %v344 = vadd.f32 0.0, %v343
        %v345 = vpop.f32.mrb[0].mxu0
        %v346 = vadd.f32 0.0, %v345
        %v347 = vpop.f32.mrb[0].mxu0
        %v348 = vpop.f32.mrb[0].mxu0
        %349 = vdwg.mxu0
        %v350 = vlaneseq
        %v351 = vshrl.u32 %v350, 7
        %v352 = vsub.s32 0, %v351
        %v353 = vrot.slane %v282, %v352
        %v354 = vlaneseq
        %v355 = vshrl.u32 %v354, 7
        %v356 = vsub.s32 0, %v355
        %v357 = vrot.slane %v283, %v356
        %v358 = vmul.f32 %v344, %v353
        %v359 = vmul.f32 %v346, %v357
        %360 = vrot.lane.b32.xlu0 %v280, 16
        %v361 = vpop.permute.xlu0 %360
        %362 = vrot.lane.b32.xlu0 %v281, 16
        %v363 = vpop.permute.xlu0 %362
        %vm364 = vcmp.lt.s32.totalorder %v292, 16
        %v365 = vsel %vm364, %v361, %v363
        %v366 = vsel %vm364, %v363, %v361
        %v367 = vpack.c.bf16 %v366, %v366
        %v368 = vpack.c.bf16 %v365, %v365
        %v370 = vunpack.c.l.b16 %v286
        %v371 = vpack.c.b16 %v370, %v370
        %372 = vrot.lane.b32.xlu0 %v371, 120
        %v373 = vpop.permute.xlu0 %372
        %v375 = vsel %vm298, %v373, 0
        %v378 = vsel %vm302, %v367, 0
        %v381 = vsel %vm302, %v368, 0
        %383 = vmatprep.subr.bf16.mxu0 %v381
        %384 = vmatpush1.bf16.msra.mxu0 %v378
        %385 = vmatprep.subr.bf16.mxu0 0
        %386 = vmatpush1.bf16.msra.mxu0 0
        %387 = vmatprep.subr.bf16.mxu0 0
        %388 = vmatpush1.bf16.msra.mxu0 0
        %389 = vmatprep.subr.bf16.mxu0 0
        %390 = vmatpush1.bf16.msra.mxu0 0
        %391 = vmatprep.subr.bf16.mxu0 0
        %392 = vmatpush1.bf16.msra.mxu0 0
        %393 = vmatprep.subr.bf16.mxu0 0
        %394 = vmatpush1.bf16.msra.mxu0 0
        %395 = vmatprep.subr.bf16.mxu0 0
        %396 = vmatpush1.bf16.msra.mxu0 0
        %397 = vmatprep.subr.bf16.mxu0 0
        %398 = vmatpush1.bf16.msra.mxu0 0
        %399 = vmatprep.subr.bf16.mxu0 0
        %400 = vmatpush1.bf16.msra.mxu0 0
        %401 = vmatprep.subr.bf16.mxu0 0
        %402 = vmatpush1.bf16.msra.mxu0 0
        %403 = vmatprep.subr.bf16.mxu0 0
        %404 = vmatpush1.bf16.msra.mxu0 0
        %405 = vmatprep.subr.bf16.mxu0 0
        %406 = vmatpush1.bf16.msra.mxu0 0
        %407 = vmatprep.subr.bf16.mxu0 0
        %408 = vmatpush1.bf16.msra.mxu0 0
        %409 = vmatprep.subr.bf16.mxu0 0
        %410 = vmatpush1.bf16.msra.mxu0 0
        %411 = vmatprep.subr.bf16.mxu0 0
        %412 = vmatpush1.bf16.msra.mxu0 0
        %413 = vmatprep.subr.bf16.mxu0 0
        %414 = vmatpush1.bf16.msra.mxu0 0
        %415 = vmatprep.mubr.bf16.mxu0 0
        %416 = vmatmul.mubr.bf16.gmra.mrb[0].mxu0 %v375
        %v417 = vpop.f32.mrb[0].mxu0
        %v418 = vadd.f32 0.0, %v417
        %v419 = vpop.f32.mrb[0].mxu0
        %v420 = vadd.f32 0.0, %v419
        %v421 = vpop.f32.mrb[0].mxu0
        %v422 = vpop.f32.mrb[0].mxu0
        %423 = vdwg.mxu0
        %v424 = vlaneseq
        %v425 = vshrl.u32 %v424, 7
        %v426 = vsub.s32 1, %v425
        %v427 = vrot.slane %v282, %v426
        %v428 = vlaneseq
        %v429 = vshrl.u32 %v428, 7
        %v430 = vsub.s32 1, %v429
        %v431 = vrot.slane %v283, %v430
        %v432 = vmul.f32 %v418, %v427
        %v433 = vmul.f32 %v420, %v431
        %v434 = vadd.f32 %v358, %v432
        %v435 = vadd.f32 %v359, %v433
        %436 = vrot.lane.b32.xlu0 %v280, 15
        %v437 = vpop.permute.xlu0 %436
        %438 = vrot.lane.b32.xlu0 %v281, 15
        %v439 = vpop.permute.xlu0 %438
        %vm440 = vcmp.lt.s32.totalorder %v292, 15
        %v441 = vsel %vm440, %v437, %v439
        %v442 = vsel %vm440, %v439, %v437
        %v443 = vpack.c.bf16 %v442, %v442
        %v444 = vpack.c.bf16 %v441, %v441
        %445 = vrot.lane.b32.xlu0 %v371, 112
        %v446 = vpop.permute.xlu0 %445
        %v448 = vsel %vm298, %v446, 0
        %v451 = vsel %vm302, %v443, 0
        %v454 = vsel %vm302, %v444, 0
        %456 = vmatprep.subr.bf16.mxu0 %v454
        %457 = vmatpush1.bf16.msra.mxu0 %v451
        %458 = vmatprep.subr.bf16.mxu0 0
        %459 = vmatpush1.bf16.msra.mxu0 0
        %460 = vmatprep.subr.bf16.mxu0 0
        %461 = vmatpush1.bf16.msra.mxu0 0
        %462 = vmatprep.subr.bf16.mxu0 0
        %463 = vmatpush1.bf16.msra.mxu0 0
        %464 = vmatprep.subr.bf16.mxu0 0
        %465 = vmatpush1.bf16.msra.mxu0 0
        %466 = vmatprep.subr.bf16.mxu0 0
        %467 = vmatpush1.bf16.msra.mxu0 0
        %468 = vmatprep.subr.bf16.mxu0 0
        %469 = vmatpush1.bf16.msra.mxu0 0
        %470 = vmatprep.subr.bf16.mxu0 0
        %471 = vmatpush1.bf16.msra.mxu0 0
        %472 = vmatprep.subr.bf16.mxu0 0
        %473 = vmatpush1.bf16.msra.mxu0 0
        %474 = vmatprep.subr.bf16.mxu0 0
        %475 = vmatpush1.bf16.msra.mxu0 0
        %476 = vmatprep.subr.bf16.mxu0 0
        %477 = vmatpush1.bf16.msra.mxu0 0
        %478 = vmatprep.subr.bf16.mxu0 0
        %479 = vmatpush1.bf16.msra.mxu0 0
        %480 = vmatprep.subr.bf16.mxu0 0
        %481 = vmatpush1.bf16.msra.mxu0 0
        %482 = vmatprep.subr.bf16.mxu0 0
        %483 = vmatpush1.bf16.msra.mxu0 0
        %484 = vmatprep.subr.bf16.mxu0 0
        %485 = vmatpush1.bf16.msra.mxu0 0
        %486 = vmatprep.subr.bf16.mxu0 0
        %487 = vmatpush1.bf16.msra.mxu0 0
        %488 = vmatprep.mubr.bf16.mxu0 0
        %489 = vmatmul.mubr.bf16.gmra.mrb[0].mxu0 %v448
        %v490 = vpop.f32.mrb[0].mxu0
        %v491 = vadd.f32 0.0, %v490
        %v492 = vpop.f32.mrb[0].mxu0
        %v493 = vadd.f32 0.0, %v492
        %v494 = vpop.f32.mrb[0].mxu0
        %v495 = vpop.f32.mrb[0].mxu0
        %496 = vdwg.mxu0
        %v497 = vlaneseq
        %v498 = vshrl.u32 %v497, 7
        %v499 = vsub.s32 2, %v498
        %v500 = vrot.slane %v282, %v499
        %v501 = vlaneseq
        %v502 = vshrl.u32 %v501, 7
        %v503 = vsub.s32 2, %v502
        %v504 = vrot.slane %v283, %v503
        %v505 = vmul.f32 %v491, %v500
        %v506 = vmul.f32 %v493, %v504
        %v507 = vadd.f32 %v434, %v505
        %v508 = vadd.f32 %v435, %v506
        %509 = vrot.lane.b32.xlu0 %v280, 1
        %v510 = vpop.permute.xlu0 %509
        %511 = vrot.lane.b32.xlu0 %v281, 1
        %v512 = vpop.permute.xlu0 %511
        %vm513 = vcmp.lt.s32.totalorder %v292, 1
        %v514 = vsel %vm513, %v510, %v512
        %v515 = vsel %vm513, %v512, %v510
        %v516 = vpack.c.bf16 %v515, %v515
        %v517 = vpack.c.bf16 %v514, %v514
        %518 = vrot.lane.b32.xlu0 %v371, 104
        %v519 = vpop.permute.xlu0 %518
        %v521 = vsel %vm298, %v519, 0
        %v524 = vsel %vm302, %v516, 0
        %v527 = vsel %vm302, %v517, 0
        %529 = vmatprep.subr.bf16.mxu0 %v527
        %530 = vmatpush1.bf16.msra.mxu0 %v524
        %531 = vmatprep.subr.bf16.mxu0 0
        %532 = vmatpush1.bf16.msra.mxu0 0
        %533 = vmatprep.subr.bf16.mxu0 0
        %534 = vmatpush1.bf16.msra.mxu0 0
        %535 = vmatprep.subr.bf16.mxu0 0
        %536 = vmatpush1.bf16.msra.mxu0 0
        %537 = vmatprep.subr.bf16.mxu0 0
        %538 = vmatpush1.bf16.msra.mxu0 0
        %539 = vmatprep.subr.bf16.mxu0 0
        %540 = vmatpush1.bf16.msra.mxu0 0
        %541 = vmatprep.subr.bf16.mxu0 0
        %542 = vmatpush1.bf16.msra.mxu0 0
        %543 = vmatprep.subr.bf16.mxu0 0
        %544 = vmatpush1.bf16.msra.mxu0 0
        %545 = vmatprep.subr.bf16.mxu0 0
        %546 = vmatpush1.bf16.msra.mxu0 0
        %547 = vmatprep.subr.bf16.mxu0 0
        %548 = vmatpush1.bf16.msra.mxu0 0
        %549 = vmatprep.subr.bf16.mxu0 0
        %550 = vmatpush1.bf16.msra.mxu0 0
        %551 = vmatprep.subr.bf16.mxu0 0
        %552 = vmatpush1.bf16.msra.mxu0 0
        %553 = vmatprep.subr.bf16.mxu0 0
        %554 = vmatpush1.bf16.msra.mxu0 0
        %555 = vmatprep.subr.bf16.mxu0 0
        %556 = vmatpush1.bf16.msra.mxu0 0
        %557 = vmatprep.subr.bf16.mxu0 0
        %558 = vmatpush1.bf16.msra.mxu0 0
        %559 = vmatprep.subr.bf16.mxu0 0
        %560 = vmatpush1.bf16.msra.mxu0 0
        %561 = vmatprep.mubr.bf16.mxu0 0
        %562 = vmatmul.mubr.bf16.gmra.mrb[0].mxu0 %v521
        %v563 = vpop.f32.mrb[0].mxu0
        %v564 = vadd.f32 0.0, %v563
        %v565 = vpop.f32.mrb[0].mxu0
        %v566 = vadd.f32 0.0, %v565
        %v567 = vpop.f32.mrb[0].mxu0
        %v568 = vpop.f32.mrb[0].mxu0
        %569 = vdwg.mxu0
        %v570 = vlaneseq
        %v571 = vshrl.u32 %v570, 7
        %v572 = vsub.s32 3, %v571
        %v573 = vrot.slane %v282, %v572
        %v574 = vlaneseq
        %v575 = vshrl.u32 %v574, 7
        %v576 = vsub.s32 3, %v575
        %v577 = vrot.slane %v283, %v576
        %v578 = vmul.f32 %v564, %v573
        %v579 = vmul.f32 %v566, %v577
        %v580 = vadd.f32 %v507, %v578
        %v581 = vadd.f32 %v508, %v579
        %v582 = vpack.c.bf16 %v280, %v280
        %v583 = vpack.c.bf16 %v281, %v281
        %584 = vrot.lane.b32.xlu0 %v371, 96
        %v585 = vpop.permute.xlu0 %584
        %v587 = vsel %vm298, %v585, 0
        %v590 = vsel %vm302, %v582, 0
        %v593 = vsel %vm302, %v583, 0
        %595 = vmatprep.subr.bf16.mxu0 %v593
        %596 = vmatpush1.bf16.msra.mxu0 %v590
        %597 = vmatprep.subr.bf16.mxu0 0
        %598 = vmatpush1.bf16.msra.mxu0 0
        %599 = vmatprep.subr.bf16.mxu0 0
        %600 = vmatpush1.bf16.msra.mxu0 0
        %601 = vmatprep.subr.bf16.mxu0 0
        %602 = vmatpush1.bf16.msra.mxu0 0
        %603 = vmatprep.subr.bf16.mxu0 0
        %604 = vmatpush1.bf16.msra.mxu0 0
        %605 = vmatprep.subr.bf16.mxu0 0
        %606 = vmatpush1.bf16.msra.mxu0 0
        %607 = vmatprep.subr.bf16.mxu0 0
        %608 = vmatpush1.bf16.msra.mxu0 0
        %609 = vmatprep.subr.bf16.mxu0 0
        %610 = vmatpush1.bf16.msra.mxu0 0
        %611 = vmatprep.subr.bf16.mxu0 0
        %612 = vmatpush1.bf16.msra.mxu0 0
        %613 = vmatprep.subr.bf16.mxu0 0
        %614 = vmatpush1.bf16.msra.mxu0 0
        %615 = vmatprep.subr.bf16.mxu0 0
        %616 = vmatpush1.bf16.msra.mxu0 0
        %617 = vmatprep.subr.bf16.mxu0 0
        %618 = vmatpush1.bf16.msra.mxu0 0
        %619 = vmatprep.subr.bf16.mxu0 0
        %620 = vmatpush1.bf16.msra.mxu0 0
        %621 = vmatprep.subr.bf16.mxu0 0
        %622 = vmatpush1.bf16.msra.mxu0 0
        %623 = vmatprep.subr.bf16.mxu0 0
        %624 = vmatpush1.bf16.msra.mxu0 0
        %625 = vmatprep.subr.bf16.mxu0 0
        %626 = vmatpush1.bf16.msra.mxu0 0
        %627 = vmatprep.mubr.bf16.mxu0 0
        %628 = vmatmul.mubr.bf16.gmra.mrb[0].mxu0 %v587
        %v629 = vpop.f32.mrb[0].mxu0
        %v630 = vadd.f32 0.0, %v629
        %v631 = vpop.f32.mrb[0].mxu0
        %v632 = vadd.f32 0.0, %v631
        %v633 = vpop.f32.mrb[0].mxu0
        %v634 = vpop.f32.mrb[0].mxu0
        %635 = vdwg.mxu0
        %v636 = vadd.f32 %v580, %v630
        %v637 = vadd.f32 %v581, %v632
        %638 = vrot.lane.b32.xlu0 %v280, 127
        %v639 = vpop.permute.xlu0 %638
        %640 = vrot.lane.b32.xlu0 %v281, 127
        %v641 = vpop.permute.xlu0 %640
        %vm642 = vcmp.lt.s32.totalorder %v292, 127
        %v643 = vsel %vm642, %v639, %v641
        %v644 = vsel %vm642, %v641, %v639
        %v645 = vpack.c.bf16 %v643, %v643
        %v646 = vpack.c.bf16 %v644, %v644
        %647 = vrot.lane.b32.xlu0 %v371, 88
        %v648 = vpop.permute.xlu0 %647
        %v650 = vsel %vm298, %v648, 0
        %v653 = vsel %vm302, %v645, 0
        %v656 = vsel %vm302, %v646, 0
        %658 = vmatprep.subr.bf16.mxu0 %v656
        %659 = vmatpush1.bf16.msra.mxu0 %v653
        %660 = vmatprep.subr.bf16.mxu0 0
        %661 = vmatpush1.bf16.msra.mxu0 0
        %662 = vmatprep.subr.bf16.mxu0 0
        %663 = vmatpush1.bf16.msra.mxu0 0
        %664 = vmatprep.subr.bf16.mxu0 0
        %665 = vmatpush1.bf16.msra.mxu0 0
        %666 = vmatprep.subr.bf16.mxu0 0
        %667 = vmatpush1.bf16.msra.mxu0 0
        %668 = vmatprep.subr.bf16.mxu0 0
        %669 = vmatpush1.bf16.msra.mxu0 0
        %670 = vmatprep.subr.bf16.mxu0 0
        %671 = vmatpush1.bf16.msra.mxu0 0
        %672 = vmatprep.subr.bf16.mxu0 0
        %673 = vmatpush1.bf16.msra.mxu0 0
        %674 = vmatprep.subr.bf16.mxu0 0
        %675 = vmatpush1.bf16.msra.mxu0 0
        %676 = vmatprep.subr.bf16.mxu0 0
        %677 = vmatpush1.bf16.msra.mxu0 0
        %678 = vmatprep.subr.bf16.mxu0 0
        %679 = vmatpush1.bf16.msra.mxu0 0
        %680 = vmatprep.subr.bf16.mxu0 0
        %681 = vmatpush1.bf16.msra.mxu0 0
        %682 = vmatprep.subr.bf16.mxu0 0
        %683 = vmatpush1.bf16.msra.mxu0 0
        %684 = vmatprep.subr.bf16.mxu0 0
        %685 = vmatpush1.bf16.msra.mxu0 0
        %686 = vmatprep.subr.bf16.mxu0 0
        %687 = vmatpush1.bf16.msra.mxu0 0
        %688 = vmatprep.subr.bf16.mxu0 0
        %689 = vmatpush1.bf16.msra.mxu0 0
        %690 = vmatprep.mubr.bf16.mxu0 0
        %691 = vmatmul.mubr.bf16.gmra.mrb[0].mxu0 %v650
        %v692 = vpop.f32.mrb[0].mxu0
        %v693 = vadd.f32 0.0, %v692
        %v694 = vpop.f32.mrb[0].mxu0
        %v695 = vadd.f32 0.0, %v694
        %v696 = vpop.f32.mrb[0].mxu0
        %v697 = vpop.f32.mrb[0].mxu0
        %698 = vdwg.mxu0
        %v699 = vlaneseq
        %v700 = vshrl.u32 %v699, 7
        %v701 = vsub.s32 5, %v700
        %v702 = vrot.slane %v282, %v701
        %v703 = vlaneseq
        %v704 = vshrl.u32 %v703, 7
        %v705 = vsub.s32 5, %v704
        %v706 = vrot.slane %v283, %v705
        %v707 = vmul.f32 %v693, %v702
        %v708 = vmul.f32 %v695, %v706
        %v709 = vadd.f32 %v636, %v707
        %v710 = vadd.f32 %v637, %v708
        %711 = vrot.lane.b32.xlu0 %v280, 113
        %v712 = vpop.permute.xlu0 %711
        %713 = vrot.lane.b32.xlu0 %v281, 113
        %v714 = vpop.permute.xlu0 %713
        %vm715 = vcmp.lt.s32.totalorder %v292, 113
        %v716 = vsel %vm715, %v712, %v714
        %v717 = vsel %vm715, %v714, %v712
        %v718 = vpack.c.bf16 %v716, %v716
        %v719 = vpack.c.bf16 %v717, %v717
        %720 = vrot.lane.b32.xlu0 %v371, 80
        %v721 = vpop.permute.xlu0 %720
        %v723 = vsel %vm298, %v721, 0
        %v726 = vsel %vm302, %v718, 0
        %v729 = vsel %vm302, %v719, 0
        %731 = vmatprep.subr.bf16.mxu0 %v729
        %732 = vmatpush1.bf16.msra.mxu0 %v726
        %733 = vmatprep.subr.bf16.mxu0 0
        %734 = vmatpush1.bf16.msra.mxu0 0
        %735 = vmatprep.subr.bf16.mxu0 0
        %736 = vmatpush1.bf16.msra.mxu0 0
        %737 = vmatprep.subr.bf16.mxu0 0
        %738 = vmatpush1.bf16.msra.mxu0 0
        %739 = vmatprep.subr.bf16.mxu0 0
        %740 = vmatpush1.bf16.msra.mxu0 0
        %741 = vmatprep.subr.bf16.mxu0 0
        %742 = vmatpush1.bf16.msra.mxu0 0
        %743 = vmatprep.subr.bf16.mxu0 0
        %744 = vmatpush1.bf16.msra.mxu0 0
        %745 = vmatprep.subr.bf16.mxu0 0
        %746 = vmatpush1.bf16.msra.mxu0 0
        %747 = vmatprep.subr.bf16.mxu0 0
        %748 = vmatpush1.bf16.msra.mxu0 0
        %749 = vmatprep.subr.bf16.mxu0 0
        %750 = vmatpush1.bf16.msra.mxu0 0
        %751 = vmatprep.subr.bf16.mxu0 0
        %752 = vmatpush1.bf16.msra.mxu0 0
        %753 = vmatprep.subr.bf16.mxu0 0
        %754 = vmatpush1.bf16.msra.mxu0 0
        %755 = vmatprep.subr.bf16.mxu0 0
        %756 = vmatpush1.bf16.msra.mxu0 0
        %757 = vmatprep.subr.bf16.mxu0 0
        %758 = vmatpush1.bf16.msra.mxu0 0
        %759 = vmatprep.subr.bf16.mxu0 0
        %760 = vmatpush1.bf16.msra.mxu0 0
        %761 = vmatprep.subr.bf16.mxu0 0
        %762 = vmatpush1.bf16.msra.mxu0 0
        %763 = vmatprep.mubr.bf16.mxu0 0
        %764 = vmatmul.mubr.bf16.gmra.mrb[0].mxu0 %v723
        %v765 = vpop.f32.mrb[0].mxu0
        %v766 = vadd.f32 0.0, %v765
        %v767 = vpop.f32.mrb[0].mxu0
        %v768 = vadd.f32 0.0, %v767
        %v769 = vpop.f32.mrb[0].mxu0
        %v770 = vpop.f32.mrb[0].mxu0
        %771 = vdwg.mxu0
        %v772 = vlaneseq
        %v773 = vshrl.u32 %v772, 7
        %v774 = vsub.s32 6, %v773
        %v775 = vrot.slane %v282, %v774
        %v776 = vlaneseq
        %v777 = vshrl.u32 %v776, 7
        %v778 = vsub.s32 6, %v777
        %v779 = vrot.slane %v283, %v778
        %v780 = vmul.f32 %v766, %v775
        %v781 = vmul.f32 %v768, %v779
        %v782 = vadd.f32 %v709, %v780
        %v783 = vadd.f32 %v710, %v781
        %784 = vrot.lane.b32.xlu0 %v280, 112
        %v785 = vpop.permute.xlu0 %784
        %786 = vrot.lane.b32.xlu0 %v281, 112
        %v787 = vpop.permute.xlu0 %786
        %vm788 = vcmp.lt.s32.totalorder %v292, 112
        %v789 = vsel %vm788, %v785, %v787
        %v790 = vsel %vm788, %v787, %v785
        %v791 = vpack.c.bf16 %v789, %v789
        %v792 = vpack.c.bf16 %v790, %v790
        %793 = vrot.lane.b32.xlu0 %v371, 72
        %v794 = vpop.permute.xlu0 %793
        %v796 = vsel %vm298, %v794, 0
        %v799 = vsel %vm302, %v791, 0
        %v802 = vsel %vm302, %v792, 0
        %804 = vmatprep.subr.bf16.mxu0 %v802
        %805 = vmatpush1.bf16.msra.mxu0 %v799
        %806 = vmatprep.subr.bf16.mxu0 0
        %807 = vmatpush1.bf16.msra.mxu0 0
        %808 = vmatprep.subr.bf16.mxu0 0
        %809 = vmatpush1.bf16.msra.mxu0 0
        %810 = vmatprep.subr.bf16.mxu0 0
        %811 = vmatpush1.bf16.msra.mxu0 0
        %812 = vmatprep.subr.bf16.mxu0 0
        %813 = vmatpush1.bf16.msra.mxu0 0
        %814 = vmatprep.subr.bf16.mxu0 0
        %815 = vmatpush1.bf16.msra.mxu0 0
        %816 = vmatprep.subr.bf16.mxu0 0
        %817 = vmatpush1.bf16.msra.mxu0 0
        %818 = vmatprep.subr.bf16.mxu0 0
        %819 = vmatpush1.bf16.msra.mxu0 0
        %820 = vmatprep.subr.bf16.mxu0 0
        %821 = vmatpush1.bf16.msra.mxu0 0
        %822 = vmatprep.subr.bf16.mxu0 0
        %823 = vmatpush1.bf16.msra.mxu0 0
        %824 = vmatprep.subr.bf16.mxu0 0
        %825 = vmatpush1.bf16.msra.mxu0 0
        %826 = vmatprep.subr.bf16.mxu0 0
        %827 = vmatpush1.bf16.msra.mxu0 0
        %828 = vmatprep.subr.bf16.mxu0 0
        %829 = vmatpush1.bf16.msra.mxu0 0
        %830 = vmatprep.subr.bf16.mxu0 0
        %831 = vmatpush1.bf16.msra.mxu0 0
        %832 = vmatprep.subr.bf16.mxu0 0
        %833 = vmatpush1.bf16.msra.mxu0 0
        %834 = vmatprep.subr.bf16.mxu0 0
        %835 = vmatpush1.bf16.msra.mxu0 0
        %836 = vmatprep.mubr.bf16.mxu0 0
        %837 = vmatmul.mubr.bf16.gmra.mrb[0].mxu0 %v796
        %v838 = vpop.f32.mrb[0].mxu0
        %v839 = vadd.f32 0.0, %v838
        %v840 = vpop.f32.mrb[0].mxu0
        %v841 = vadd.f32 0.0, %v840
        %v842 = vpop.f32.mrb[0].mxu0
        %v843 = vpop.f32.mrb[0].mxu0
        %844 = vdwg.mxu0
        %v845 = vlaneseq
        %v846 = vshrl.u32 %v845, 7
        %v847 = vsub.s32 7, %v846
        %v848 = vrot.slane %v282, %v847
        %v849 = vlaneseq
        %v850 = vshrl.u32 %v849, 7
        %v851 = vsub.s32 7, %v850
        %v852 = vrot.slane %v283, %v851
        %v853 = vmul.f32 %v839, %v848
        %v854 = vmul.f32 %v841, %v852
        %v855 = vadd.f32 %v782, %v853
        %v856 = vadd.f32 %v783, %v854
        %857 = vrot.lane.b32.xlu0 %v280, 111
        %v858 = vpop.permute.xlu0 %857
        %859 = vrot.lane.b32.xlu0 %v281, 111
        %v860 = vpop.permute.xlu0 %859
        %vm861 = vcmp.lt.s32.totalorder %v292, 111
        %v862 = vsel %vm861, %v858, %v860
        %v863 = vsel %vm861, %v860, %v858
        %v864 = vpack.c.bf16 %v862, %v862
        %v865 = vpack.c.bf16 %v863, %v863
        %866 = vrot.lane.b32.xlu0 %v371, 64
        %v867 = vpop.permute.xlu0 %866
        %v869 = vsel %vm298, %v867, 0
        %v872 = vsel %vm302, %v864, 0
        %v875 = vsel %vm302, %v865, 0
        %877 = vmatprep.subr.bf16.mxu0 %v875
        %878 = vmatpush1.bf16.msra.mxu0 %v872
        %879 = vmatprep.subr.bf16.mxu0 0
        %880 = vmatpush1.bf16.msra.mxu0 0
        %881 = vmatprep.subr.bf16.mxu0 0
        %882 = vmatpush1.bf16.msra.mxu0 0
        %883 = vmatprep.subr.bf16.mxu0 0
        %884 = vmatpush1.bf16.msra.mxu0 0
        %885 = vmatprep.subr.bf16.mxu0 0
        %886 = vmatpush1.bf16.msra.mxu0 0
        %887 = vmatprep.subr.bf16.mxu0 0
        %888 = vmatpush1.bf16.msra.mxu0 0
        %889 = vmatprep.subr.bf16.mxu0 0
        %890 = vmatpush1.bf16.msra.mxu0 0
        %891 = vmatprep.subr.bf16.mxu0 0
        %892 = vmatpush1.bf16.msra.mxu0 0
        %893 = vmatprep.subr.bf16.mxu0 0
        %894 = vmatpush1.bf16.msra.mxu0 0
        %895 = vmatprep.subr.bf16.mxu0 0
        %896 = vmatpush1.bf16.msra.mxu0 0
        %897 = vmatprep.subr.bf16.mxu0 0
        %898 = vmatpush1.bf16.msra.mxu0 0
        %899 = vmatprep.subr.bf16.mxu0 0
        %900 = vmatpush1.bf16.msra.mxu0 0
        %901 = vmatprep.subr.bf16.mxu0 0
        %902 = vmatpush1.bf16.msra.mxu0 0
        %903 = vmatprep.subr.bf16.mxu0 0
        %904 = vmatpush1.bf16.msra.mxu0 0
        %905 = vmatprep.subr.bf16.mxu0 0
        %906 = vmatpush1.bf16.msra.mxu0 0
        %907 = vmatprep.subr.bf16.mxu0 0
        %908 = vmatpush1.bf16.msra.mxu0 0
        %909 = vmatprep.mubr.bf16.mxu0 0
        %910 = vmatmul.mubr.bf16.gmra.mrb[0].mxu0 %v869
        %v911 = vpop.f32.mrb[0].mxu0
        %v912 = vadd.f32 0.0, %v911
        %v913 = vpop.f32.mrb[0].mxu0
        %v914 = vadd.f32 0.0, %v913
        %v915 = vpop.f32.mrb[0].mxu0
        %v916 = vpop.f32.mrb[0].mxu0
        %917 = vdwg.mxu0
        %v918 = vlaneseq
        %v919 = vshrl.u32 %v918, 7
        %v920 = vsub.s32 0, %v919
        %v921 = vrot.slane %v284, %v920
        %v922 = vlaneseq
        %v923 = vshrl.u32 %v922, 7
        %v924 = vsub.s32 0, %v923
        %v925 = vrot.slane %v285, %v924
        %v926 = vmul.f32 %v912, %v921
        %v927 = vmul.f32 %v914, %v925
        %v928 = vadd.f32 %v855, %v926
        %v929 = vadd.f32 %v856, %v927
        %930 = vst [vmem:[%s256] sm:$0xff] %v928
        %931 = vst [vmem:[%s256 + $0x8] sm:$0xff] %v929
        %v932 = vadd.f32 %v928, %v929
        %933 = vadd.xlane.f32.xlu0 %v932
        %v934 = vpop.xlane.xlu0 %933
        %vm935 = vcmask 7168
        %936 = vst.msk [vmem:[%s274] sm:$0xff] %vm935, %v934
        %v937 = vmul.f32 %v928, %v928
        %v938 = vmul.f32 %v929, %v929
        %v939 = vadd.f32 %v937, %v938
        %940 = vadd.xlane.f32.xlu0 %v939
        %v941 = vpop.xlane.xlu0 %940
        %942 = vst.msk [vmem:[%s278] sm:$0xff] %vm935, %v941
        %s943 = sand.u32 %s100, 1
        %s944 = scalar_lea.sflag [#allocation4], %s943
        %s945 = sand.u32 %s100, 1
        %s946 = smul.addr %s945, 16
        %s947 = scalar_lea.vmem [#allocation7], %s946
        %p948 = scmp.lt.s32.totalorder %s24, 1
        %s949 = scalar_select %p948, %s24, 1
        %s950 = smul.addr %s949, 8
        %s951 = scalar_lea.vmem %s4, %s950
        %p952 = scmp.lt.s32.totalorder %s24, 1
        %s953 = scalar_select %p952, %s24, 1
        %s954 = smul.addr %s953, 8
        %s955 = scalar_lea.vmem %s5, %s954
        // Predicated region
        $region41: #{tpu_custom_call.1} parent=31 // pred_check
          %p956 = pneg %p110
        $region42: #{tpu_custom_call.1} parent=31 // pred_check_branch
          %958 = sbr.rel (%p956) target = $region44
        $region43: #{tpu_custom_call.1} parent=31 // pred_region
          %s959 = smul.u32 2, %s24
          %s961 = ssub.s32 256, 256
          %962 = vsyncadd %s944, %s961
          %s963 = smul.addr %s959, 128
          %s964 = scalar_lea.hbm %s3, %s963
          %s966 = sshll.u32 %s947, 4
          %s967 = int_to_ptr.vmem [resolvable:$true] %s966
          %969 = dma.vmem_to_hbm [thread:$0]  %s967, 256, %s964, %s944
        $region44: #{tpu_custom_call.1} parent=31 // pred_fallthru
          _
        // Predicated region
        $region45: #{tpu_custom_call.1} parent=31 // pred_check
          %p970 = pneg %p136
        $region46: #{tpu_custom_call.1} parent=31 // pred_check_branch
          %972 = sbr.rel (%p970) target = $region48
        $region47: #{tpu_custom_call.1} parent=31 // pred_region
          _
        $region48: #{tpu_custom_call.1} parent=31 // pred_fallthru
          _
        // Predicated region
        $region49: #{tpu_custom_call.1} parent=31 // pred_check
          %p973 = pneg %p162
        $region50: #{tpu_custom_call.1} parent=31 // pred_check_branch
          %975 = sbr.rel (%p973) target = $region52
        $region51: #{tpu_custom_call.1} parent=31 // pred_region
          _
        $region52: #{tpu_custom_call.1} parent=31 // pred_fallthru
          _
      $region32: #{tpu_custom_call.1} parent=5 // pred_fallthru
        _
      %p976 = scmp.le.s32.totalorder 2, %s19
      // Predicated region
      $region53: #{tpu_custom_call.1} parent=5 // pred_check
        %p977 = pneg %p976
      $region54: #{tpu_custom_call.1} parent=5 // pred_check_branch
        %979 = sbr.rel (%p977) target = $region56
      $region55: #{tpu_custom_call.1} parent=5 // pred_region
        %s980 = ssub.s32 %s19, 2
        // Predicated region
        $region57: #{tpu_custom_call.1} parent=55 // pred_check
          %p981 = pneg %p116
        $region58: #{tpu_custom_call.1} parent=55 // pred_check_branch
          %983 = sbr.rel (%p981) target = $region60
        $region59: #{tpu_custom_call.1} parent=55 // pred_region
          %s984 = sand.u32 %s101, 1
          %s985 = scalar_lea.sflag [#allocation4], %s984
          %s986 = sand.u32 %s101, 1
          %s987 = smul.addr %s986, 16
          %s988 = scalar_lea.vmem [#allocation7], %s987
          %989 = dma.done %s985, 256
        $region60: #{tpu_custom_call.1} parent=55 // pred_fallthru
          _
        // Predicated region
        $region61: #{tpu_custom_call.1} parent=55 // pred_check
          %p990 = pneg %p142
        $region62: #{tpu_custom_call.1} parent=55 // pred_check_branch
          %992 = sbr.rel (%p990) target = $region64
        $region63: #{tpu_custom_call.1} parent=55 // pred_region
          %p993 = scmp.lt.s32.totalorder %s25, 1
          %s994 = scalar_select %p993, %s25, 1
          %s995 = smul.addr %s994, 8
          %s996 = scalar_lea.vmem %s4, %s995
        $region64: #{tpu_custom_call.1} parent=55 // pred_fallthru
          _
        // Predicated region
        $region65: #{tpu_custom_call.1} parent=55 // pred_check
          %p997 = pneg %p168
        $region66: #{tpu_custom_call.1} parent=55 // pred_check_branch
          %999 = sbr.rel (%p997) target = $region68
        $region67: #{tpu_custom_call.1} parent=55 // pred_region
          %p1000 = scmp.lt.s32.totalorder %s25, 1
          %s1001 = scalar_select %p1000, %s25, 1
          %s1002 = smul.addr %s1001, 8
          %s1003 = scalar_lea.vmem %s5, %s1002
        $region68: #{tpu_custom_call.1} parent=55 // pred_fallthru
          _
      $region56: #{tpu_custom_call.1} parent=5 // pred_fallthru
        _
    $region6: #{tpu_custom_call.1} parent=1 // loop_footer
      %s23 = sadd.s32 1, %s19
    $region7: #{tpu_custom_call.1} parent=1 // loop_footer_branch
      %18 = sbr.rel target = $region3
    $region8: #{tpu_custom_call.1} parent=1 // loop_exit
      _
    %1004 = vsyncpa [#allocation3], 1
    %s1005 = scalar_lea.sflag [#allocation3], 1
    %1006 = vsyncpa %s1005, 1
    %1007 = vsyncpa [#allocation6], 1
    %1008 = vsyncpa [#allocation4], 1
    %s1009 = scalar_lea.sflag [#allocation4], 1
    %1010 = vsyncpa %s1009, 1

</llo_original>
